<compile_context>
chip_gen: v6e
topology: v6e:2x2x1
jax: 0.10.0
libtpu: 0.0.40
codegen_flags: <defaults>
</compile_context>

<pallas_src>
import functools

import jax
import jax.numpy as jnp
from jax import lax
from jax.experimental import pallas as pl
from jax.experimental.pallas import tpu as pltpu


def _round_up(x, m):
    return -(-x // m) * m


def _conv_pool_relu_kernel(p_ref, w_ref, b_ref, o_ref, *, B, Ppad, use_relu):
    """One grid step = B images.

    p_ref: (B, 4*Ppad, KKC)  bf16 im2col patches, grouped by 2x2-pool quadrant
    w_ref: (KKC, Cpad)       bf16 fused conv weights (C_out zero-padded)
    b_ref: (1, Cpad)         f32 bias (zero-padded)
    o_ref: (B, Ppad, Cpad)   f32 pooled output (flattened H_p*W_p, row-padded)
    """
    KKC = p_ref.shape[-1]
    Cpad = w_ref.shape[-1]

    # One tall MXU matmul over all B images and all 4 pool quadrants.
    p = p_ref[...].reshape(B * 4 * Ppad, KKC)
    y = jnp.dot(p, w_ref[...], preferred_element_type=jnp.float32)
    y = y.reshape(B, 4, Ppad, Cpad)

    # 2x2 max pool = elementwise max over the four quadrant blocks.
    # Bias after the max is equivalent (bias is constant over the pool window).
    pooled = jnp.max(y, axis=1) + b_ref[...].reshape(1, 1, Cpad)
    if use_relu:
        pooled = jnp.maximum(pooled, 0.0)
    o_ref[...] = pooled.astype(o_ref.dtype)


def embedding_net_with_pooling(x_nchw, weight_oihw, bias,
                               *, stride=1, padding=0, use_relu=True):
    """Forward pass of EmbeddingNetWithPooling. Input/output are NCHW (PyTorch)."""
    N, C_in, H, W = x_nchw.shape
    C_out, C_in_w, KH, KW = weight_oihw.shape
    assert C_in_w == C_in and KH == KW, "square kernels / matching C_in only"
    K = KH

    H_out = (H + 2 * padding - K) // stride + 1
    W_out = (W + 2 * padding - K) // stride + 1
    H_p, W_p = H_out // 2, W_out // 2                  # MaxPool2d(2,2), floor
    assert H_p >= 1 and W_p >= 1, "degenerate conv/pool output"
    KKC = K * K * C_in
    P = H_p * W_p
    Ppad = _round_up(P, 16)                            # 16-row align (bf16 sublanes)
    Cpad = _round_up(C_out, 128)                       # lane-dense output stores

    # ---- im2col in one fused XLA op.  Output feature order = (c_in, kh, kw).
    patches = lax.conv_general_dilated_patches(
        x_nchw, (K, K), (stride, stride),
        [(padding, padding), (padding, padding)],
        dimension_numbers=("NCHW", "OIHW", "NCHW"))    # (N, KKC, H_out, W_out)
    patches = jnp.transpose(patches, (0, 2, 3, 1))     # (N, H_out, W_out, KKC)

    # ---- regroup the 2x2 pool quadrants into 4 contiguous P-row blocks/image.
    patches = patches[:, :2 * H_p, :2 * W_p, :]
    patches = patches.reshape(N, H_p, 2, W_p, 2, KKC)
    patches = jnp.transpose(patches, (0, 2, 4, 1, 3, 5)).reshape(N, 4, P, KKC)
    if Ppad != P:
        patches = jnp.pad(patches, ((0, 0), (0, 0), (0, Ppad - P), (0, 0)))

    # ---- choose B images per grid step against a VMEM budget (double-buffered),
    # keep grid >= 2 when N >= 2 (v7x megacore), rebalance to minimize padding.
    bytes_per_image = 4 * Ppad * KKC * 2 + Ppad * Cpad * 4   # bf16 in + f32 out
    vmem_budget = 24 * 1024 * 1024
    B_cap = max(1, int(vmem_budget // (2 * bytes_per_image)))
    B = max(1, min(B_cap, -(-N // 2)))
    G = -(-N // B)
    B = -(-N // G)                                     # rebalance
    G = -(-N // B)
    N_pad = G * B
    if N_pad != N:
        patches = jnp.pad(patches, ((0, N_pad - N), (0, 0), (0, 0), (0, 0)))
    patches = patches.reshape(N_pad, 4 * Ppad, KKC).astype(jnp.bfloat16)

    # ---- weights in (c_in, kh, kw) contraction order (matches patches), padded.
    w = weight_oihw.reshape(C_out, KKC).T              # (KKC, C_out)
    w = jnp.pad(w, ((0, 0), (0, Cpad - C_out))).astype(jnp.bfloat16)
    b = jnp.pad(bias.reshape(1, C_out).astype(jnp.float32),
                ((0, 0), (0, Cpad - C_out)))

    kernel = functools.partial(_conv_pool_relu_kernel,
                               B=B, Ppad=Ppad, use_relu=use_relu)

    out = pl.pallas_call(
        kernel,
        out_shape=jax.ShapeDtypeStruct((N_pad, Ppad, Cpad), jnp.float32),
        grid_spec=pltpu.PrefetchScalarGridSpec(
            num_scalar_prefetch=0,
            grid=(G,),
            in_specs=[
                pl.BlockSpec((B, 4 * Ppad, KKC), lambda n: (n, 0, 0)),
                pl.BlockSpec((KKC, Cpad), lambda n: (0, 0)),
                pl.BlockSpec((1, Cpad), lambda n: (0, 0)),
            ],
            out_specs=pl.BlockSpec((B, Ppad, Cpad), lambda n: (n, 0, 0)),
        ),
        compiler_params=pltpu.CompilerParams(
            dimension_semantics=("parallel",),
            vmem_limit_bytes=32 * 1024 * 1024),
    )(patches, w, b)

    # drop batch / row / channel padding, back to NCHW
    out = out[:N, :P, :C_out].reshape(N, H_p, W_p, C_out)
    return jnp.transpose(out, (0, 3, 1, 2)).astype(x_nchw.dtype)


def _reference(x_nchw, weight_oihw, bias, stride, padding, use_relu):
    y = lax.conv_general_dilated(
        x_nchw, weight_oihw, window_strides=(stride, stride),
        padding=[(padding, padding), (padding, padding)],
        dimension_numbers=("NCHW", "OIHW", "NCHW"))
    y = y + bias.reshape(1, -1, 1, 1)
    y = lax.reduce_window(y, -jnp.inf, lax.max,
                          (1, 1, 2, 2), (1, 1, 2, 2), "VALID")
    if use_relu:
        y = jnp.maximum(y, 0.0)
    return y


if __name__ == "__main__":
    key = jax.random.PRNGKey(0)
    kx, kw, kb = jax.random.split(key, 3)

    # EmbeddingNetWithPooling(input_depth=4, layer1_stride=1, layer1_kernel_size=3,
    #                         layer1_output_channels=8, layer1_padding=0, use_relu=True)
    N, C_in, H, W = 2, 4, 16, 16
    C_out, K, stride, padding = 8, 3, 1, 0

    x = jax.random.normal(kx, (N, C_in, H, W), dtype=jnp.float32)
    fan_in = C_in * K * K
    bound = 1.0 / (fan_in ** 0.5)          # deterministic, PyTorch-style uniform init
    weight = jax.random.uniform(kw, (C_out, C_in, K, K), jnp.float32, -bound, bound)
    bias = jax.random.uniform(kb, (C_out,), jnp.float32, -bound, bound)

    out = embedding_net_with_pooling(x, weight, bias,
                                     stride=stride, padding=padding, use_relu=True)
    out = jax.block_until_ready(out)

    ref = _reference(x, weight, bias, stride, padding, True)
    assert out.shape == ref.shape == (N, C_out, (H - K + 1) // 2, (W - K + 1) // 2)
    # bf16 patch/weight stream -> tolerance sized for bf16 input rounding
    assert jnp.allclose(out, ref, atol=2e-2, rtol=2e-2), "mismatch vs JAX reference"
    print("KERNEL_OK")
</pallas_src>

<mosaic_0001>
module attributes {stable_mosaic.version = 11 : i64} {
  func.func @_conv_pool_relu_kernel(%arg0: i32, %arg1: memref<1x256x36xbf16, #tpu.memory_space<vmem>>, %arg2: memref<36x128xbf16, #tpu.memory_space<vmem>>, %arg3: memref<1x128xf32, #tpu.memory_space<vmem>>, %arg4: memref<1x64x128xf32, #tpu.memory_space<vmem>>) attributes {dimension_semantics = [#tpu.dimension_semantics<parallel>], iteration_bounds = array<i64: 2>, scalar_prefetch = 0 : i64, scratch_operands = 0 : i64, tpu.core_type = #tpu.core_type<tc>, window_params = [{transform_indices = @transform_0, window_bounds = array<i64: 1, 256, 36>}, {pipeline_mode = #tpu.pipeline_mode<synchronous>, transform_indices = @transform_1, window_bounds = array<i64: 36, 128>}, {pipeline_mode = #tpu.pipeline_mode<synchronous>, transform_indices = @transform_2, window_bounds = array<i64: 1, 128>}, {transform_indices = @transform_3, window_bounds = array<i64: 1, 64, 128>}]} {
    %c0 = arith.constant 0 : index
    %c0_0 = arith.constant 0 : index
    %c0_1 = arith.constant 0 : index
    %0 = vector.load %arg1[%c0, %c0_0, %c0_1] : memref<1x256x36xbf16, #tpu.memory_space<vmem>>, vector<1x256x36xbf16>
    %1 = vector.shape_cast %0 : vector<1x256x36xbf16> to vector<256x36xbf16>
    %c0_2 = arith.constant 0 : index
    %c0_3 = arith.constant 0 : index
    %2 = vector.load %arg2[%c0_2, %c0_3] : memref<36x128xbf16, #tpu.memory_space<vmem>>, vector<36x128xbf16>
    %cst = arith.constant dense<0.000000e+00> : vector<256x128xf32>
    %3 = tpu.matmul %1, %2, %cst {dimension_numbers = #tpu.dot_dimension_numbers<[1], [0], [0], [1], [0, 0, 1, 1], [], []>} : vector<256x36xbf16>, vector<36x128xbf16>, vector<256x128xf32> -> vector<256x128xf32>
    %4 = vector.shape_cast %3 : vector<256x128xf32> to vector<1x4x64x128xf32>
    %cst_4 = arith.constant dense<0xFF800000> : vector<1x64x128xf32>
    %5 = vector.multi_reduction <maximumf>, %4, %cst_4 [1] : vector<1x4x64x128xf32> to vector<1x64x128xf32>
    %c0_5 = arith.constant 0 : index
    %c0_6 = arith.constant 0 : index
    %6 = vector.load %arg3[%c0_5, %c0_6] : memref<1x128xf32, #tpu.memory_space<vmem>>, vector<1x128xf32>
    %7 = vector.shape_cast %6 : vector<1x128xf32> to vector<1x1x128xf32>
    %8 = vector.broadcast %7 : vector<1x1x128xf32> to vector<1x64x128xf32>
    %9 = arith.addf %5, %8 : vector<1x64x128xf32>
    %cst_7 = arith.constant 0.000000e+00 : f32
    %10 = vector.broadcast %cst_7 : f32 to vector<1x64x128xf32>
    %11 = arith.maximumf %9, %10 : vector<1x64x128xf32>
    %c0_8 = arith.constant 0 : index
    %c0_9 = arith.constant 0 : index
    %c0_10 = arith.constant 0 : index
    %12 = vector.load %arg4[%c0_8, %c0_9, %c0_10] : memref<1x64x128xf32, #tpu.memory_space<vmem>>, vector<1x64x128xf32>
    tpu.vector_store %arg4[%c0_8, %c0_9, %c0_10], %11 {strides = array<i32>} : memref<1x64x128xf32, #tpu.memory_space<vmem>>, vector<1x64x128xf32>,
    return
  }
  func.func @transform_0(%arg0: i32) -> (i32, i32, i32) {
    %c0_i32 = arith.constant 0 : i32
    %c0_i32_0 = arith.constant 0 : i32
    %c0_i32_1 = arith.constant 0 : i32
    return %arg0, %c0_i32, %c0_i32_0 : i32, i32, i32
  }
  func.func @transform_1(%arg0: i32) -> (i32, i32) {
    %c0_i32 = arith.constant 0 : i32
    %c0_i32_0 = arith.constant 0 : i32
    %c0_i32_1 = arith.constant 0 : i32
    return %c0_i32, %c0_i32_0 : i32, i32
  }
  func.func @transform_2(%arg0: i32) -> (i32, i32) {
    %c0_i32 = arith.constant 0 : i32
    %c0_i32_0 = arith.constant 0 : i32
    %c0_i32_1 = arith.constant 0 : i32
    return %c0_i32, %c0_i32_0 : i32, i32
  }
  func.func @transform_3(%arg0: i32) -> (i32, i32, i32) {
    %c0_i32 = arith.constant 0 : i32
    %c0_i32_0 = arith.constant 0 : i32
    %c0_i32_1 = arith.constant 0 : i32
    return %arg0, %c0_i32, %c0_i32_0 : i32, i32, i32
  }
}

</mosaic_0001>

<llo_original>
// kernel: tpu_custom_call.1
$region0: #{tpu_custom_call.1}
  #allocation0 [shape = 'u32[]', space=smem, size = 0x4, offset = 0x4, fixed_abs, tag = 'smem constant byte address 0x4 - core index']
  #allocation1 [shape = 'u32[144,128]{1,0:T(1,128)}', space=vmem, size = 0x12000, scoped, tag = 'internal scratch']
  %s0 = inlined_call_operand.vmem [shape: bf16[2,256,36], index: 0, kind: input, shape index: {}]
  %s1 = inlined_call_operand.vmem [shape: bf16[36,128], index: 1, kind: input, shape index: {}]
  %s2 = inlined_call_operand.vmem [shape: f32[1,128], index: 2, kind: input, shape index: {}]
  %s3 = inlined_call_operand.hbm [shape: f32[2,64,128], index: 3, kind: output, shape index: {}]
  %s4 = sld [smem:[#allocation0]]
  $region45: #{tpu_custom_call.1} parent=0
    _
  %s6 = ssub.s32 1, %s4
  %s7 = scalar_select 0, %s6, %s4
  $region1: #{tpu_custom_call.1} parent=0
    #allocation2 [shape = 'u8[65536]{0}', space=vmem, size = 0x10000, scoped, tag = 'output window, operand 0']
    #allocation3 [shape = 's32[2]{0}', space=sflag, size = 0x8, scoped, tag = 'scoped memory for tpu_custom_call.1']
    %8 = vsyncpa [#allocation3], 0
    %s9 = scalar_lea.sflag [#allocation3], 1
    %10 = vsyncpa %s9, 0
    loop: start=0, step=1, limit=4
    $region2: #{tpu_custom_call.1} parent=1 // loop_pre_header
      _
    $region3: #{tpu_custom_call.1} parent=1 // loop_header
      %s12 = sphi 0, %s16
      %p13 = scmp.ge.s32.totalorder %s12, 4
      %s22 = sphi 0, %s24
      %s25 = sphi 0, %s22
      %s26 = sphi 0, %s25
      %s42 = sphi 0, %s26
      %s46 = sphi 0, %s46
      %s48 = sphi 0, %s46
      %s49 = sphi 0, %s48
      %s63 = sphi 0, %s49
      %s67 = sphi 0, %s67
      %s69 = sphi 0, %s67
      %s70 = sphi 0, %s69
      %s84 = sphi 0, %s70
      %s90 = sphi 0, %s92
      %s93 = sphi 0, %s90
      %s94 = sphi 0, %s93
      %s110 = sphi 0, %s94
    $region4: #{tpu_custom_call.1} parent=1 // loop_header_branch
      %15 = sbr.rel (%p13) target = $region8
    $region5: #{tpu_custom_call.1} parent=1 // loop_body
      %s17 = ssub.s32 %s12, 1
      %s18 = ssub.s32 %s12, 2
      %s19 = sadd.s32 %s12, 1
      %s20 = ssub.s32 %s12, %s19
      %p21 = scmp.eq.s32.totalorder %s20, 0
      %s23 = sadd.s32 %s22, 1
      %s24 = scalar_select %p21, %s22, %s23
      %p27 = pneg %p21
      %p28 = scmp.eq.s32.totalorder %s12, 1
      %p29 = por %p27, %p28
      %p30 = scmp.ne.s32.totalorder %s22, %s25
      %p31 = scmp.eq.s32.totalorder %s12, 0
      %p32 = por %p30, %p31
      %p33 = scmp.ne.s32.totalorder %s22, %s25
      %p34 = scmp.eq.s32.totalorder %s17, 1
      %p35 = por %p33, %p34
      %p36 = scmp.ne.s32.totalorder %s25, %s26
      %p37 = scmp.eq.s32.totalorder %s17, 0
      %p38 = por %p36, %p37
      %p39 = scmp.ne.s32.totalorder %s25, %s26
      %p40 = scmp.eq.s32.totalorder %s18, 1
      %p41 = por %p39, %p40
      %p43 = scmp.ne.s32.totalorder %s26, %s42
      %p44 = scmp.eq.s32.totalorder %s18, 0
      %p45 = por %p43, %p44
      %s47 = sadd.s32 %s46, 1
      %p50 = scmp.eq.s32.totalorder %s12, 1
      %p51 = scmp.ne.s32.totalorder %s46, %s48
      %p52 = scmp.eq.s32.totalorder %s12, 0
      %p53 = por %p51, %p52
      %p54 = scmp.ne.s32.totalorder %s46, %s48
      %p55 = scmp.eq.s32.totalorder %s17, 1
      %p56 = por %p54, %p55
      %p57 = scmp.ne.s32.totalorder %s48, %s49
      %p58 = scmp.eq.s32.totalorder %s17, 0
      %p59 = por %p57, %p58
      %p60 = scmp.ne.s32.totalorder %s48, %s49
      %p61 = scmp.eq.s32.totalorder %s18, 1
      %p62 = por %p60, %p61
      %p64 = scmp.ne.s32.totalorder %s49, %s63
      %p65 = scmp.eq.s32.totalorder %s18, 0
      %p66 = por %p64, %p65
      %s68 = sadd.s32 %s67, 1
      %p71 = scmp.eq.s32.totalorder %s12, 1
      %p72 = scmp.ne.s32.totalorder %s67, %s69
      %p73 = scmp.eq.s32.totalorder %s12, 0
      %p74 = por %p72, %p73
      %p75 = scmp.ne.s32.totalorder %s67, %s69
      %p76 = scmp.eq.s32.totalorder %s17, 1
      %p77 = por %p75, %p76
      %p78 = scmp.ne.s32.totalorder %s69, %s70
      %p79 = scmp.eq.s32.totalorder %s17, 0
      %p80 = por %p78, %p79
      %p81 = scmp.ne.s32.totalorder %s69, %s70
      %p82 = scmp.eq.s32.totalorder %s18, 1
      %p83 = por %p81, %p82
      %p85 = scmp.ne.s32.totalorder %s70, %s84
      %p86 = scmp.eq.s32.totalorder %s18, 0
      %p87 = por %p85, %p86
      %s88 = ssub.s32 %s12, %s19
      %p89 = scmp.eq.s32.totalorder %s88, 0
      %s91 = sadd.s32 %s90, 1
      %s92 = scalar_select %p89, %s90, %s91
      %p95 = pneg %p89
      %p96 = scmp.eq.s32.totalorder %s12, 1
      %p97 = por %p95, %p96
      %p98 = scmp.ne.s32.totalorder %s90, %s93
      %p99 = scmp.eq.s32.totalorder %s12, 0
      %p100 = por %p98, %p99
      %p101 = scmp.ne.s32.totalorder %s90, %s93
      %p102 = scmp.eq.s32.totalorder %s17, 1
      %p103 = por %p101, %p102
      %p104 = scmp.ne.s32.totalorder %s93, %s94
      %p105 = scmp.eq.s32.totalorder %s17, 0
      %p106 = por %p104, %p105
      %p107 = scmp.ne.s32.totalorder %s93, %s94
      %p108 = scmp.eq.s32.totalorder %s18, 1
      %p109 = por %p107, %p108
      %p111 = scmp.ne.s32.totalorder %s94, %s110
      %p112 = scmp.eq.s32.totalorder %s18, 0
      %p113 = por %p111, %p112
      %p114 = scmp.le.s32.totalorder 1, %s12
      %p115 = scmp.lt.s32.totalorder %s12, 3
      %p116 = pnand %p114, %p115
      %p117 = pneg %p116
      // Predicated region
      $region9: #{tpu_custom_call.1} parent=5 // pred_check
        _
      $region10: #{tpu_custom_call.1} parent=5 // pred_check_branch
        %119 = sbr.rel (%p116) target = $region12
      $region11: #{tpu_custom_call.1} parent=5 // pred_region
        %s120 = ssub.s32 %s12, 1
        // Predicated region
        $region13: #{tpu_custom_call.1} parent=11 // pred_check
          %p121 = pneg %p59
        $region14: #{tpu_custom_call.1} parent=11 // pred_check_branch
          %123 = sbr.rel (%p121) target = $region16
        $region15: #{tpu_custom_call.1} parent=11 // pred_region
          _
        $region16: #{tpu_custom_call.1} parent=11 // pred_fallthru
          _
        // Predicated region
        $region17: #{tpu_custom_call.1} parent=11 // pred_check
          %p124 = pneg %p80
        $region18: #{tpu_custom_call.1} parent=11 // pred_check_branch
          %126 = sbr.rel (%p124) target = $region20
        $region19: #{tpu_custom_call.1} parent=11 // pred_region
          _
        $region20: #{tpu_custom_call.1} parent=11 // pred_fallthru
          _
      $region12: #{tpu_custom_call.1} parent=5 // pred_fallthru
        _
      %p127 = scmp.lt.s32.totalorder %s12, 2
      // Predicated region
      $region21: #{tpu_custom_call.1} parent=5 // pred_check
        %p128 = pneg %p127
      $region22: #{tpu_custom_call.1} parent=5 // pred_check_branch
        %130 = sbr.rel (%p128) target = $region24
      $region23: #{tpu_custom_call.1} parent=5 // pred_region
        // Predicated region
        $region25: #{tpu_custom_call.1} parent=23 // pred_check
          %p131 = pneg %p32
        $region26: #{tpu_custom_call.1} parent=23 // pred_check_branch
          %133 = sbr.rel (%p131) target = $region28
        $region27: #{tpu_custom_call.1} parent=23 // pred_region
          %p134 = scmp.lt.s32.totalorder %s12, 1
          %s135 = scalar_select %p134, %s12, 1
          %s136 = smul.addr %s135, 32
          %s137 = smul.addr %s136, 4
          %s138 = scalar_lea.vmem %s0, %s137
        $region28: #{tpu_custom_call.1} parent=23 // pred_fallthru
          _
      $region24: #{tpu_custom_call.1} parent=5 // pred_fallthru
        _
      %p139 = scmp.le.s32.totalorder 1, %s12
      %p140 = scmp.lt.s32.totalorder %s12, 3
      %p141 = pnand %p139, %p140
      %p142 = pneg %p141
      // Predicated region
      $region29: #{tpu_custom_call.1} parent=5 // pred_check
        _
      $region30: #{tpu_custom_call.1} parent=5 // pred_check_branch
        %144 = sbr.rel (%p141) target = $region32
      $region31: #{tpu_custom_call.1} parent=5 // pred_region
        %s145 = ssub.s32 %s12, 1
        %p146 = scmp.lt.s32.totalorder %s17, 1
        %s147 = scalar_select %p146, %s17, 1
        %s148 = smul.addr %s147, 32
        %s149 = smul.addr %s148, 4
        %s150 = scalar_lea.vmem %s0, %s149
        %p151 = pneg %p38
        %p152 = pneg %p35
        %p153 = pneg %p59
        %p154 = pneg %p56
        %p155 = pneg %p80
        %p156 = pneg %p77
        %p157 = pneg %p106
        %p158 = pneg %p103
        %s159 = sand.u32 %s93, 1
        %s160 = scalar_lea.sflag [#allocation3], %s159
        %s161 = sand.u32 %s93, 1
        %s162 = smul.addr %s161, 64
        %s163 = scalar_lea.vmem [#allocation2], %s162
        %p164 = scmp.lt.s32.totalorder %s17, 1
        %s165 = scalar_select %p164, %s17, 1
        %s166 = smul.addr %s165, 32
        %s167 = smul.addr %s166, 4
        %s168 = scalar_lea.vmem %s0, %s167
        %v170 = vld [vmem:[%s168] sm:$0xf]
        %v171 = vld [vmem:[%s168 + $0x4] sm:$0xf]
        %v172 = vld [vmem:[%s168 + $0x8] sm:$0xf]
        %v173 = vld [vmem:[%s168 + $0xc] sm:$0xf]
        %v174 = vld [vmem:[%s168 + $0x10] sm:$0xf]
        %v175 = vld [vmem:[%s168 + $0x14] sm:$0xf]
        %v176 = vld [vmem:[%s168 + $0x18] sm:$0xf]
        %v177 = vld [vmem:[%s168 + $0x1c] sm:$0xf]
        %v178 = vld [vmem:[%s168 + $0x20] sm:$0xf]
        %v179 = vld [vmem:[%s168 + $0x24] sm:$0xf]
        %v180 = vld [vmem:[%s168 + $0x28] sm:$0xf]
        %v181 = vld [vmem:[%s168 + $0x2c] sm:$0xf]
        %v182 = vld [vmem:[%s168 + $0x30] sm:$0xf]
        %v183 = vld [vmem:[%s168 + $0x34] sm:$0xf]
        %v184 = vld [vmem:[%s168 + $0x38] sm:$0xf]
        %v185 = vld [vmem:[%s168 + $0x3c] sm:$0xf]
        %v186 = vld [vmem:[%s168 + $0x40] sm:$0xf]
        %v187 = vld [vmem:[%s168 + $0x44] sm:$0xf]
        %v188 = vld [vmem:[%s168 + $0x48] sm:$0xf]
        %v189 = vld [vmem:[%s168 + $0x4c] sm:$0xf]
        %v190 = vld [vmem:[%s168 + $0x50] sm:$0xf]
        %v191 = vld [vmem:[%s168 + $0x54] sm:$0xf]
        %v192 = vld [vmem:[%s168 + $0x58] sm:$0xf]
        %v193 = vld [vmem:[%s168 + $0x5c] sm:$0xf]
        %v194 = vld [vmem:[%s168 + $0x60] sm:$0xf]
        %v195 = vld [vmem:[%s168 + $0x64] sm:$0xf]
        %v196 = vld [vmem:[%s168 + $0x68] sm:$0xf]
        %v197 = vld [vmem:[%s168 + $0x6c] sm:$0xf]
        %v198 = vld [vmem:[%s168 + $0x70] sm:$0xf]
        %v199 = vld [vmem:[%s168 + $0x74] sm:$0xf]
        %v200 = vld [vmem:[%s168 + $0x78] sm:$0xf]
        %v201 = vld [vmem:[%s168 + $0x7c] sm:$0xf]
        %v202 = vld [vmem:[%s1] sm:$0xf]
        %v203 = vld [vmem:[%s1 + $0x4] sm:$0xf]
        %v204 = vld [vmem:[%s1 + $0x8] sm:$0xf]
        %v205 = vld [vmem:[%s1 + $0xc] sm:$0xf]
        %v206 = vld [vmem:[%s1 + $0x10] sm:$0x3]
        %v239 = vunpack.c.l.b16 %v170
        %v240 = vunpack.c.l.b16 %v171
        %v241 = vunpack.c.l.b16 %v172
        %v242 = vunpack.c.l.b16 %v173
        %v243 = vunpack.c.l.b16 %v174
        %v244 = vunpack.c.l.b16 %v175
        %v245 = vunpack.c.l.b16 %v176
        %v246 = vunpack.c.l.b16 %v177
        %v247 = vunpack.c.l.b16 %v178
        %v248 = vunpack.c.l.b16 %v179
        %v249 = vunpack.c.l.b16 %v180
        %v250 = vunpack.c.l.b16 %v181
        %v251 = vunpack.c.l.b16 %v182
        %v252 = vunpack.c.l.b16 %v183
        %v253 = vunpack.c.l.b16 %v184
        %v254 = vunpack.c.l.b16 %v185
        %v255 = vunpack.c.l.b16 %v186
        %v256 = vunpack.c.l.b16 %v187
        %v257 = vunpack.c.l.b16 %v188
        %v258 = vunpack.c.l.b16 %v189
        %v259 = vunpack.c.l.b16 %v190
        %v260 = vunpack.c.l.b16 %v191
        %v261 = vunpack.c.l.b16 %v192
        %v262 = vunpack.c.l.b16 %v193
        %v263 = vunpack.c.l.b16 %v194
        %v264 = vunpack.c.l.b16 %v195
        %v265 = vunpack.c.l.b16 %v196
        %v266 = vunpack.c.l.b16 %v197
        %v267 = vunpack.c.l.b16 %v198
        %v268 = vunpack.c.l.b16 %v199
        %v269 = vunpack.c.l.b16 %v200
        %v270 = vunpack.c.l.b16 %v201
        %v271 = vpack.c.b16 %v240, %v239
        %v272 = vpack.c.b16 %v242, %v241
        %v273 = vpack.c.b16 %v244, %v243
        %v274 = vpack.c.b16 %v246, %v245
        %v275 = vpack.c.b16 %v248, %v247
        %v276 = vpack.c.b16 %v250, %v249
        %v277 = vpack.c.b16 %v252, %v251
        %v278 = vpack.c.b16 %v254, %v253
        %v279 = vpack.c.b16 %v256, %v255
        %v280 = vpack.c.b16 %v258, %v257
        %v281 = vpack.c.b16 %v260, %v259
        %v282 = vpack.c.b16 %v262, %v261
        %v283 = vpack.c.b16 %v264, %v263
        %v284 = vpack.c.b16 %v266, %v265
        %v285 = vpack.c.b16 %v268, %v267
        %v286 = vpack.c.b16 %v270, %v269
        %v292 = vunpack.c.l.b16 %v202
        %v293 = vunpack.c.l.b16 %v203
        %v294 = vunpack.c.l.b16 %v204
        %v295 = vunpack.c.l.b16 %v205
        %v296 = vunpack.c.l.b16 %v206
        %v297 = vpack.c.b16 %v293, %v292
        %v298 = vpack.c.b16 %v295, %v294
        %v299 = vpack.c.b16 %v296, %v296
        %vm302 = vcmask 293888
        %v304 = vsel %vm302, %v271, 0
        %v307 = vsel %vm302, %v272, 0
        %v310 = vsel %vm302, %v273, 0
        %v313 = vsel %vm302, %v274, 0
        %v316 = vsel %vm302, %v275, 0
        %v319 = vsel %vm302, %v276, 0
        %v322 = vsel %vm302, %v277, 0
        %v325 = vsel %vm302, %v278, 0
        %v328 = vsel %vm302, %v279, 0
        %v331 = vsel %vm302, %v280, 0
        %v334 = vsel %vm302, %v281, 0
        %v337 = vsel %vm302, %v282, 0
        %v340 = vsel %vm302, %v283, 0
        %v343 = vsel %vm302, %v284, 0
        %v346 = vsel %vm302, %v285, 0
        %v349 = vsel %vm302, %v286, 0
        %vm351 = vcmask 1041408
        %v353 = vsel %vm351, %v299, 0
        %355 = vmatprep.subr.bf16.mxu0 0
        %356 = vmatpush1.bf16.msra.mxu0 0
        %357 = vmatprep.subr.bf16.mxu0 0
        %358 = vmatpush1.bf16.msra.mxu0 0
        %359 = vmatprep.subr.bf16.mxu0 0
        %360 = vmatpush1.bf16.msra.mxu0 0
        %361 = vmatprep.subr.bf16.mxu0 0
        %362 = vmatpush1.bf16.msra.mxu0 0
        %363 = vmatprep.subr.bf16.mxu0 0
        %364 = vmatpush1.bf16.msra.mxu0 0
        %365 = vmatprep.subr.bf16.mxu0 0
        %366 = vmatpush1.bf16.msra.mxu0 %v353
        %367 = vmatprep.subr.bf16.mxu0 0
        %368 = vmatpush1.bf16.msra.mxu0 %v298
        %369 = vmatprep.subr.bf16.mxu0 0
        %370 = vmatpush1.bf16.msra.mxu0 %v297
        %371 = vmatprep.subr.bf16.mxu0 0
        %372 = vmatpush2.bf16.msra.mxu0 0
        %373 = vmatprep.subr.bf16.mxu0 0
        %374 = vmatpush2.bf16.msra.mxu0 0
        %375 = vmatprep.subr.bf16.mxu0 0
        %376 = vmatpush2.bf16.msra.mxu0 0
        %377 = vmatprep.subr.bf16.mxu0 0
        %378 = vmatpush2.bf16.msra.mxu0 0
        %379 = vmatprep.subr.bf16.mxu0 0
        %380 = vmatpush2.bf16.msra.mxu0 0
        %381 = vmatprep.subr.bf16.mxu0 0
        %382 = vmatpush2.bf16.msra.mxu0 0
        %383 = vmatprep.subr.bf16.mxu0 0
        %384 = vmatpush2.bf16.msra.mxu0 0
        %385 = vmatprep.subr.bf16.mxu0 0
        %386 = vmatpush2.bf16.msra.mxu0 0
        %387 = vmatprep.mubr.bf16.mxu0 0
        %388 = vmatmul.mubr.bf16.gmra.mxu0 %v304
        %v389 = vpop.f32.mrf.mxu0
        %v390 = vadd.f32 0.0, %v389
        %v391 = vpop.f32.mrf.mxu0
        %v392 = vpop.f32.mrf.mxu0
        %v393 = vadd.f32 0.0, %v392
        %v394 = vpop.f32.mrf.mxu0
        %395 = vmatprep.mubr.bf16.mxu0 0
        %396 = vmatmul.mubr.bf16.gmra.mxu0 %v307
        %v397 = vpop.f32.mrf.mxu0
        %v398 = vadd.f32 0.0, %v397
        %v399 = vpop.f32.mrf.mxu0
        %v400 = vpop.f32.mrf.mxu0
        %v401 = vadd.f32 0.0, %v400
        %v402 = vpop.f32.mrf.mxu0
        %403 = vmatprep.mubr.bf16.mxu0 0
        %404 = vmatmul.mubr.bf16.gmra.mxu0 %v310
        %v405 = vpop.f32.mrf.mxu0
        %v406 = vadd.f32 0.0, %v405
        %v407 = vpop.f32.mrf.mxu0
        %v408 = vpop.f32.mrf.mxu0
        %v409 = vadd.f32 0.0, %v408
        %v410 = vpop.f32.mrf.mxu0
        %411 = vmatprep.mubr.bf16.mxu0 0
        %412 = vmatmul.mubr.bf16.gmra.mxu0 %v313
        %v413 = vpop.f32.mrf.mxu0
        %v414 = vadd.f32 0.0, %v413
        %v415 = vpop.f32.mrf.mxu0
        %v416 = vpop.f32.mrf.mxu0
        %v417 = vadd.f32 0.0, %v416
        %v418 = vpop.f32.mrf.mxu0
        %419 = vmatprep.mubr.bf16.mxu0 0
        %420 = vmatmul.mubr.bf16.gmra.mxu0 %v316
        %v421 = vpop.f32.mrf.mxu0
        %v422 = vadd.f32 0.0, %v421
        %v423 = vpop.f32.mrf.mxu0
        %v424 = vpop.f32.mrf.mxu0
        %v425 = vadd.f32 0.0, %v424
        %v426 = vpop.f32.mrf.mxu0
        %427 = vmatprep.mubr.bf16.mxu0 0
        %428 = vmatmul.mubr.bf16.gmra.mxu0 %v319
        %v429 = vpop.f32.mrf.mxu0
        %v430 = vadd.f32 0.0, %v429
        %v431 = vpop.f32.mrf.mxu0
        %v432 = vpop.f32.mrf.mxu0
        %v433 = vadd.f32 0.0, %v432
        %v434 = vpop.f32.mrf.mxu0
        %435 = vmatprep.mubr.bf16.mxu0 0
        %436 = vmatmul.mubr.bf16.gmra.mxu0 %v322
        %v437 = vpop.f32.mrf.mxu0
        %v438 = vadd.f32 0.0, %v437
        %v439 = vpop.f32.mrf.mxu0
        %v440 = vpop.f32.mrf.mxu0
        %v441 = vadd.f32 0.0, %v440
        %v442 = vpop.f32.mrf.mxu0
        %443 = vmatprep.mubr.bf16.mxu0 0
        %444 = vmatmul.mubr.bf16.gmra.mxu0 %v325
        %v445 = vpop.f32.mrf.mxu0
        %v446 = vadd.f32 0.0, %v445
        %v447 = vpop.f32.mrf.mxu0
        %v448 = vpop.f32.mrf.mxu0
        %v449 = vadd.f32 0.0, %v448
        %v450 = vpop.f32.mrf.mxu0
        %451 = vmatprep.mubr.bf16.mxu0 0
        %452 = vmatmul.mubr.bf16.gmra.mxu0 %v328
        %v453 = vpop.f32.mrf.mxu0
        %v454 = vadd.f32 0.0, %v453
        %v455 = vpop.f32.mrf.mxu0
        %v456 = vpop.f32.mrf.mxu0
        %v457 = vadd.f32 0.0, %v456
        %v458 = vpop.f32.mrf.mxu0
        %459 = vmatprep.mubr.bf16.mxu0 0
        %460 = vmatmul.mubr.bf16.gmra.mxu0 %v331
        %v461 = vpop.f32.mrf.mxu0
        %v462 = vadd.f32 0.0, %v461
        %v463 = vpop.f32.mrf.mxu0
        %v464 = vpop.f32.mrf.mxu0
        %v465 = vadd.f32 0.0, %v464
        %v466 = vpop.f32.mrf.mxu0
        %467 = vmatprep.mubr.bf16.mxu0 0
        %468 = vmatmul.mubr.bf16.gmra.mxu0 %v334
        %v469 = vpop.f32.mrf.mxu0
        %v470 = vadd.f32 0.0, %v469
        %v471 = vpop.f32.mrf.mxu0
        %v472 = vpop.f32.mrf.mxu0
        %v473 = vadd.f32 0.0, %v472
        %v474 = vpop.f32.mrf.mxu0
        %475 = vmatprep.mubr.bf16.mxu0 0
        %476 = vmatmul.mubr.bf16.gmra.mxu0 %v337
        %v477 = vpop.f32.mrf.mxu0
        %v478 = vadd.f32 0.0, %v477
        %v479 = vpop.f32.mrf.mxu0
        %v480 = vpop.f32.mrf.mxu0
        %v481 = vadd.f32 0.0, %v480
        %v482 = vpop.f32.mrf.mxu0
        %483 = vmatprep.mubr.bf16.mxu0 0
        %484 = vmatmul.mubr.bf16.gmra.mxu0 %v340
        %v485 = vpop.f32.mrf.mxu0
        %v486 = vadd.f32 0.0, %v485
        %v487 = vpop.f32.mrf.mxu0
        %v488 = vpop.f32.mrf.mxu0
        %v489 = vadd.f32 0.0, %v488
        %v490 = vpop.f32.mrf.mxu0
        %491 = vmatprep.mubr.bf16.mxu0 0
        %492 = vmatmul.mubr.bf16.gmra.mxu0 %v343
        %v493 = vpop.f32.mrf.mxu0
        %v494 = vadd.f32 0.0, %v493
        %v495 = vpop.f32.mrf.mxu0
        %v496 = vpop.f32.mrf.mxu0
        %v497 = vadd.f32 0.0, %v496
        %v498 = vpop.f32.mrf.mxu0
        %499 = vmatprep.mubr.bf16.mxu0 0
        %500 = vmatmul.mubr.bf16.gmra.mxu0 %v346
        %v501 = vpop.f32.mrf.mxu0
        %v502 = vadd.f32 0.0, %v501
        %v503 = vpop.f32.mrf.mxu0
        %v504 = vpop.f32.mrf.mxu0
        %v505 = vadd.f32 0.0, %v504
        %v506 = vpop.f32.mrf.mxu0
        %507 = vmatprep.mubr.bf16.mxu0 0
        %508 = vmatmul.mubr.bf16.gmra.mxu0 %v349
        %v509 = vpop.f32.mrf.mxu0
        %v510 = vadd.f32 0.0, %v509
        %v511 = vpop.f32.mrf.mxu0
        %v512 = vpop.f32.mrf.mxu0
        %v513 = vadd.f32 0.0, %v512
        %v514 = vpop.f32.mrf.mxu0
        %515 = vdwg.mxu0
        %v516 = vmax.f32 %v390, %v422
        %v517 = vmax.f32 %v516, %v454
        %v518 = vmax.f32 %v517, %v486
        %v519 = vmax.f32 %v393, %v425
        %v520 = vmax.f32 %v519, %v457
        %v521 = vmax.f32 %v520, %v489
        %v522 = vmax.f32 %v398, %v430
        %v523 = vmax.f32 %v522, %v462
        %v524 = vmax.f32 %v523, %v494
        %v525 = vmax.f32 %v401, %v433
        %v526 = vmax.f32 %v525, %v465
        %v527 = vmax.f32 %v526, %v497
        %v528 = vmax.f32 %v406, %v438
        %v529 = vmax.f32 %v528, %v470
        %v530 = vmax.f32 %v529, %v502
        %v531 = vmax.f32 %v409, %v441
        %v532 = vmax.f32 %v531, %v473
        %v533 = vmax.f32 %v532, %v505
        %v534 = vmax.f32 %v414, %v446
        %v535 = vmax.f32 %v534, %v478
        %v536 = vmax.f32 %v535, %v510
        %v537 = vmax.f32 %v417, %v449
        %v538 = vmax.f32 %v537, %v481
        %v539 = vmax.f32 %v538, %v513
        %v540 = vld [vmem:[%s2] sm:$0x1]
        %v542 = vlaneseq
        %v543 = vshrl.u32 %v542, 7
        %v544 = vsub.s32 0, %v543
        %v545 = vrot.slane %v540, %v544
        %v547 = vadd.f32 %v518, %v545
        %v548 = vadd.f32 %v521, %v545
        %v549 = vadd.f32 %v524, %v545
        %v550 = vadd.f32 %v527, %v545
        %v551 = vadd.f32 %v530, %v545
        %v552 = vadd.f32 %v533, %v545
        %v553 = vadd.f32 %v536, %v545
        %v554 = vadd.f32 %v539, %v545
        %v555 = vmax.f32 %v547, 0.0
        %v556 = vmax.f32 %v548, 0.0
        %v557 = vmax.f32 %v549, 0.0
        %v558 = vmax.f32 %v550, 0.0
        %v559 = vmax.f32 %v551, 0.0
        %v560 = vmax.f32 %v552, 0.0
        %v561 = vmax.f32 %v553, 0.0
        %v562 = vmax.f32 %v554, 0.0
        %563 = vst [vmem:[%s163] sm:$0xff] %v555
        %564 = vst [vmem:[%s163 + $0x8] sm:$0xff] %v556
        %565 = vst [vmem:[%s163 + $0x10] sm:$0xff] %v557
        %566 = vst [vmem:[%s163 + $0x18] sm:$0xff] %v558
        %567 = vst [vmem:[%s163 + $0x20] sm:$0xff] %v559
        %568 = vst [vmem:[%s163 + $0x28] sm:$0xff] %v560
        %569 = vst [vmem:[%s163 + $0x30] sm:$0xff] %v561
        %570 = vst [vmem:[%s163 + $0x38] sm:$0xff] %v562
        %s571 = sand.u32 %s93, 1
        %s572 = scalar_lea.sflag [#allocation3], %s571
        %s573 = sand.u32 %s93, 1
        %s574 = smul.addr %s573, 64
        %s575 = scalar_lea.vmem [#allocation2], %s574
        // Predicated region
        $region33: #{tpu_custom_call.1} parent=31 // pred_check
          %p576 = pneg %p103
        $region34: #{tpu_custom_call.1} parent=31 // pred_check_branch
          %578 = sbr.rel (%p576) target = $region36
        $region35: #{tpu_custom_call.1} parent=31 // pred_region
          %s580 = ssub.s32 1024, 1024
          %581 = vsyncadd %s572, %s580
          %s582 = smul.addr %s17, 8
          %s583 = smul.addr %s582, 128
          %s584 = scalar_lea.hbm %s3, %s583
          %s585 = sshll.u32 %s575, 4
          %s586 = int_to_ptr.vmem [resolvable:$true] %s585
          %591 = dma.vmem_to_hbm [thread:$0]  %s586, 1024, %s584, %s572, 128, 128, 8
        $region36: #{tpu_custom_call.1} parent=31 // pred_fallthru
          _
      $region32: #{tpu_custom_call.1} parent=5 // pred_fallthru
        _
      %p592 = scmp.le.s32.totalorder 2, %s12
      // Predicated region
      $region37: #{tpu_custom_call.1} parent=5 // pred_check
        %p593 = pneg %p592
      $region38: #{tpu_custom_call.1} parent=5 // pred_check_branch
        %595 = sbr.rel (%p593) target = $region40
      $region39: #{tpu_custom_call.1} parent=5 // pred_region
        %s596 = ssub.s32 %s12, 2
        // Predicated region
        $region41: #{tpu_custom_call.1} parent=39 // pred_check
          %p597 = pneg %p109
        $region42: #{tpu_custom_call.1} parent=39 // pred_check_branch
          %599 = sbr.rel (%p597) target = $region44
        $region43: #{tpu_custom_call.1} parent=39 // pred_region
          %s600 = sand.u32 %s94, 1
          %s601 = scalar_lea.sflag [#allocation3], %s600
          %s602 = sand.u32 %s94, 1
          %s603 = smul.addr %s602, 64
          %s604 = scalar_lea.vmem [#allocation2], %s603
          %605 = dma.done %s601, 1024
        $region44: #{tpu_custom_call.1} parent=39 // pred_fallthru
          _
      $region40: #{tpu_custom_call.1} parent=5 // pred_fallthru
        _
    $region6: #{tpu_custom_call.1} parent=1 // loop_footer
      %s16 = sadd.s32 1, %s12
    $region7: #{tpu_custom_call.1} parent=1 // loop_footer_branch
      %11 = sbr.rel target = $region3
    $region8: #{tpu_custom_call.1} parent=1 // loop_exit
      _
    %606 = vsyncpa [#allocation3], 1
    %s607 = scalar_lea.sflag [#allocation3], 1
    %608 = vsyncpa %s607, 1

</llo_original>
